<compile_context>
chip_gen: v7x
topology: tpu7x:2x2x1
jax: 0.10.0
libtpu: 0.0.40
codegen_flags: <defaults>
</compile_context>

<pallas_src>
import functools

import jax
import jax.numpy as jnp
from jax import lax
from jax.experimental import pallas as pl
from jax.experimental.pallas import tpu as pltpu


def _tensorcores_per_device():
    """Best-effort TensorCore count per JAX device (2 on v7x / megacore)."""
    try:
        kind = jax.devices()[0].device_kind.lower()
    except Exception:
        return 2  # safe default: keep the per-batch parallel grid
    single_tc = ("v5e", "v5 lite", "v5litepod", "v6e", "v6 lite", "trillium")
    if any(s in kind for s in single_tc):
        return 1
    return 2


_TCS_PER_DEVICE = _tensorcores_per_device()


def _conv3x3_im2col_kernel(x_ref, w_ref, b_ref, o_ref, rhs_ref, *, W, HW, Cin):
    """3x3 same-padding conv as a single fused im2col matmul.

    x_ref:   (B_blk, Cin, HWP)  NCHW-flattened input rows, zero-padded by
                                (W+1) on each side of the H*W axis.
    w_ref:   (Cout, K_pad)      im2col weight matrix; column t*Cin+c holds
                                weight[o, c, kh, kw] for tap t = kh*3+kw,
                                padded with zero columns up to K_pad.
    b_ref:   (Cout, 1)          bias column.
    o_ref:   (B_blk, Cout, HW)  lane-dense NCHW-flattened output.
    rhs_ref: (K_pad, B_blk*HW)  VMEM scratch holding the im2col RHS.
    """
    B_blk = x_ref.shape[0]
    HWP = x_ref.shape[2]
    K_pad = rhs_ref.shape[0]
    K = 9 * Cin

    # Left/right wrap masks on the flattened spatial axis.  Top/bottom taps
    # land in the zero padding so they need no mask at all.
    lane = lax.broadcasted_iota(jnp.int32, (1, HWP), 1)
    if W & (W - 1) == 0:
        cmod = lane & (W - 1)          # strength-reduced modulo (W power of 2)
    else:
        cmod = lane % W

    # Zero the padded tail rows of the im2col RHS.  Done unconditionally every
    # step (one tiny masked store) so it is correct even when the grid axis is
    # sharded across TensorCores (each core has its own scratch).
    if K_pad > K:
        rhs_ref[K:, :] = jnp.zeros((K_pad - K, rhs_ref.shape[1]), rhs_ref.dtype)

    # Build the (9*Cin, B_blk*HW) im2col RHS: 9 static sublane stores per batch
    # element; every tap is a static lane slice of the VMEM-resident row.
    for b in range(B_blk):
        xp = x_ref[b]                               # (Cin, HWP)
        x_ctr = xp                                  # taps with dw == 0
        x_lft = jnp.where(cmod != 0, xp, 0.0)       # taps with dw == -1
        x_rgt = jnp.where(cmod != 1, xp, 0.0)       # taps with dw == +1
        for t in range(9):
            dh, dw = t // 3 - 1, t % 3 - 1
            src = x_lft if dw == -1 else (x_rgt if dw == 1 else x_ctr)
            start = (W + 1) + dh * W + dw           # static lane offset
            rhs_ref[t * Cin:(t + 1) * Cin, b * HW:(b + 1) * HW] = (
                src[:, start:start + HW])

    # One fused MXU matmul (Cout, K_pad) @ (K_pad, B_blk*HW); bias added once.
    out = jnp.dot(w_ref[...], rhs_ref[...],
                  preferred_element_type=jnp.float32)
    out = out + b_ref[...].astype(jnp.float32)

    for b in range(B_blk):
        o_ref[b] = out[:, b * HW:(b + 1) * HW].astype(o_ref.dtype)


@jax.jit
def main_wrapper_forward(x_nchw, weight, bias):
    """Equivalent of Main_wrapper(Conv2d(Cin, Cout, 3, padding=1)).forward(x).

    x_nchw: (N, Cin, H, W) float32
    weight: (Cout, Cin, 3, 3) float32   (PyTorch layout)
    bias:   (Cout,) float32
    returns (N, Cout, H, W) float32
    """
    N, Cin, H, W = x_nchw.shape
    Cout = weight.shape[0]
    HW = H * W
    # Lane-dense unmasked stores need H*W to be a multiple of 128; W static.
    assert HW % 128 == 0, "H*W must be a multiple of 128"
    pad = W + 1                    # the left/right mask derivation assumes this
    HWP = HW + 2 * pad

    K = 9 * Cin
    K_pad = -(-K // 8) * 8         # round contraction dim up to a sublane tile

    # Batch elements per grid step: one per step on dual-TC chips (both cores
    # busy, still lane-dense); whole batch in one step on single-TC v5e/v6e.
    if _TCS_PER_DEVICE >= 2 and N >= 2:
        b_blk = 1
    else:
        b_blk = N
    grid = (N // b_blk,)

    # NCHW flattened over (H, W): a free reshape (no transpose, no relayout),
    # plus one tiny 1-D pad so every conv tap is a static lane slice.
    x_flat = x_nchw.reshape(N, Cin, HW)
    x_pad = jnp.pad(x_flat, ((0, 0), (0, 0), (pad, pad)))

    # (Cout, Cin, 3, 3) -> (Cout, 9*Cin) im2col weight matrix (one MXU tile),
    # zero-padded to K_pad columns.  288 floats, done once.
    w_mat = jnp.transpose(weight, (0, 2, 3, 1)).reshape(Cout, K)
    w_mat = jnp.pad(w_mat, ((0, 0), (0, K_pad - K)))
    b_col = bias.reshape(Cout, 1)

    out_flat = pl.pallas_call(
        functools.partial(_conv3x3_im2col_kernel, W=W, HW=HW, Cin=Cin),
        out_shape=jax.ShapeDtypeStruct((N, Cout, HW), x_nchw.dtype),
        grid_spec=pltpu.PrefetchScalarGridSpec(
            num_scalar_prefetch=0,
            grid=grid,
            in_specs=[
                pl.BlockSpec((b_blk, Cin, HWP), lambda n: (n, 0, 0)),
                pl.BlockSpec((Cout, K_pad), lambda n: (0, 0)),
                pl.BlockSpec((Cout, 1), lambda n: (0, 0)),
            ],
            out_specs=pl.BlockSpec((b_blk, Cout, HW), lambda n: (n, 0, 0)),
            scratch_shapes=[pltpu.VMEM((K_pad, b_blk * HW), jnp.float32)],
        ),
        compiler_params=pltpu.CompilerParams(
            dimension_semantics=("parallel",)),
    )(x_pad, w_mat, b_col)

    # Output is already NCHW-flattened; this reshape is free.
    return out_flat.reshape(N, Cout, H, W)


def _reference_conv(x_nchw, weight, bias):
    # Pure-JAX reference (same semantics as nn.Conv2d(..., padding=1)).
    out = lax.conv_general_dilated(
        x_nchw, weight,
        window_strides=(1, 1),
        padding=((1, 1), (1, 1)),
        dimension_numbers=("NCHW", "OIHW", "NCHW"),
        precision=lax.Precision.HIGHEST,
    )
    return out + bias[None, :, None, None]


if __name__ == "__main__":
    N, Cin, H, W, Cout = 2, 4, 16, 16, 8

    key = jax.random.PRNGKey(0)
    kx, kw, kb = jax.random.split(key, 3)

    x = jax.random.normal(kx, (N, Cin, H, W), dtype=jnp.float32)
    # Deterministic "kaiming-uniform-like" init for the wrapped Conv2d.
    fan_in = Cin * 3 * 3
    bound = float(fan_in) ** -0.5
    weight = jax.random.uniform(kw, (Cout, Cin, 3, 3), minval=-bound,
                                maxval=bound, dtype=jnp.float32)
    bias = jax.random.uniform(kb, (Cout,), minval=-bound, maxval=bound,
                              dtype=jnp.float32)

    out = jax.block_until_ready(main_wrapper_forward(x, weight, bias))

    ref = _reference_conv(x, weight, bias)
    assert out.shape == (N, Cout, H, W)
    max_err = float(jnp.max(jnp.abs(out - ref)))
    # Tolerance leaves headroom for MXU f32-pass rounding; any structural bug
    # (wrong tap, missing mask, missing bias) produces errors >> 1e-3.
    assert jnp.allclose(out, ref, atol=1e-3, rtol=1e-3), (
        f"mismatch vs reference (max abs err {max_err})")

    # TODO(synk): save_recorded_features / inter_channel_div are host-side
    # bookkeeping (file I/O, similarity logging), disabled by default, and not
    # part of the compute path.
    print("KERNEL_OK")
</pallas_src>

<mosaic_0001>
module attributes {stable_mosaic.version = 11 : i64} {
  func.func @_conv3x3_im2col_kernel(%arg0: i32, %arg1: memref<1x4x290xf32, #tpu.memory_space<vmem>>, %arg2: memref<8x40xf32, #tpu.memory_space<vmem>>, %arg3: memref<8x1xf32, #tpu.memory_space<vmem>>, %arg4: memref<1x8x256xf32, #tpu.memory_space<vmem>>, %arg5: memref<40x256xf32, #tpu.memory_space<vmem>>) attributes {dimension_semantics = [#tpu.dimension_semantics<parallel>], iteration_bounds = array<i64: 2>, scalar_prefetch = 0 : i64, scratch_operands = 1 : i64, tpu.core_type = #tpu.core_type<tc>, window_params = [{transform_indices = @transform_0, window_bounds = array<i64: 1, 4, 290>}, {pipeline_mode = #tpu.pipeline_mode<synchronous>, transform_indices = @transform_1, window_bounds = array<i64: 8, 40>}, {pipeline_mode = #tpu.pipeline_mode<synchronous>, transform_indices = @transform_2, window_bounds = array<i64: 8, 1>}, {transform_indices = @transform_3, window_bounds = array<i64: 1, 8, 256>}]} {
    %0 = tpu.iota {dimensions = array<i32: 1>} : vector<1x290xi32>
    %c15_i32 = arith.constant 15 : i32
    %1 = vector.broadcast %c15_i32 : i32 to vector<1x290xi32>
    %2 = arith.andi %0, %1 : vector<1x290xi32>
    %cst = arith.constant 0.000000e+00 : f32
    %3 = vector.broadcast %cst : f32 to vector<4x256xf32>
    %c36 = arith.constant 36 : index
    %c0 = arith.constant 0 : index
    %4 = vector.load %arg5[%c36, %c0] : memref<40x256xf32, #tpu.memory_space<vmem>>, vector<4x256xf32>
    tpu.vector_store %arg5[%c36, %c0], %3 {strides = array<i32>} : memref<40x256xf32, #tpu.memory_space<vmem>>, vector<4x256xf32>,
    %c0_0 = arith.constant 0 : index
    %c0_1 = arith.constant 0 : index
    %c0_2 = arith.constant 0 : index
    %5 = vector.load %arg1[%c0_0, %c0_1, %c0_2] : memref<1x4x290xf32, #tpu.memory_space<vmem>>, vector<1x4x290xf32>
    %6 = vector.shape_cast %5 : vector<1x4x290xf32> to vector<4x290xf32>
    %c0_i32 = arith.constant 0 : i32
    %7 = vector.broadcast %c0_i32 : i32 to vector<1x290xi32>
    %8 = arith.cmpi ne, %2, %7 : vector<1x290xi32>
    %cst_3 = arith.constant 0.000000e+00 : f32
    %9 = vector.shape_cast %8 : vector<1x290xi1> to vector<1x290xi1>
    %10 = vector.broadcast %9 : vector<1x290xi1> to vector<4x290xi1>
    %11 = vector.broadcast %cst_3 : f32 to vector<4x290xf32>
    %12 = arith.select %10, %6, %11 : vector<4x290xi1>, vector<4x290xf32>
    %c1_i32 = arith.constant 1 : i32
    %13 = vector.broadcast %c1_i32 : i32 to vector<1x290xi32>
    %14 = arith.cmpi ne, %2, %13 : vector<1x290xi32>
    %cst_4 = arith.constant 0.000000e+00 : f32
    %15 = vector.shape_cast %14 : vector<1x290xi1> to vector<1x290xi1>
    %16 = vector.broadcast %15 : vector<1x290xi1> to vector<4x290xi1>
    %17 = vector.broadcast %cst_4 : f32 to vector<4x290xf32>
    %18 = arith.select %16, %6, %17 : vector<4x290xi1>, vector<4x290xf32>
    %19 = vector.extract_strided_slice %12 {offsets = [0, 0], sizes = [4, 256], strides = [1, 1]} : vector<4x290xf32> to vector<4x256xf32>
    %c0_5 = arith.constant 0 : index
    %c0_6 = arith.constant 0 : index
    %20 = vector.load %arg5[%c0_5, %c0_6] : memref<40x256xf32, #tpu.memory_space<vmem>>, vector<4x256xf32>
    tpu.vector_store %arg5[%c0_5, %c0_6], %19 {strides = array<i32>} : memref<40x256xf32, #tpu.memory_space<vmem>>, vector<4x256xf32>,
    %21 = vector.extract_strided_slice %6 {offsets = [0, 1], sizes = [4, 256], strides = [1, 1]} : vector<4x290xf32> to vector<4x256xf32>
    %c4 = arith.constant 4 : index
    %c0_7 = arith.constant 0 : index
    %22 = vector.load %arg5[%c4, %c0_7] : memref<40x256xf32, #tpu.memory_space<vmem>>, vector<4x256xf32>
    tpu.vector_store %arg5[%c4, %c0_7], %21 {strides = array<i32>} : memref<40x256xf32, #tpu.memory_space<vmem>>, vector<4x256xf32>,
    %23 = vector.extract_strided_slice %18 {offsets = [0, 2], sizes = [4, 256], strides = [1, 1]} : vector<4x290xf32> to vector<4x256xf32>
    %c8 = arith.constant 8 : index
    %c0_8 = arith.constant 0 : index
    %24 = vector.load %arg5[%c8, %c0_8] : memref<40x256xf32, #tpu.memory_space<vmem>>, vector<4x256xf32>
    tpu.vector_store %arg5[%c8, %c0_8], %23 {strides = array<i32>} : memref<40x256xf32, #tpu.memory_space<vmem>>, vector<4x256xf32>,
    %25 = vector.extract_strided_slice %12 {offsets = [0, 16], sizes = [4, 256], strides = [1, 1]} : vector<4x290xf32> to vector<4x256xf32>
    %c12 = arith.constant 12 : index
    %c0_9 = arith.constant 0 : index
    %26 = vector.load %arg5[%c12, %c0_9] : memref<40x256xf32, #tpu.memory_space<vmem>>, vector<4x256xf32>
    tpu.vector_store %arg5[%c12, %c0_9], %25 {strides = array<i32>} : memref<40x256xf32, #tpu.memory_space<vmem>>, vector<4x256xf32>,
    %27 = vector.extract_strided_slice %6 {offsets = [0, 17], sizes = [4, 256], strides = [1, 1]} : vector<4x290xf32> to vector<4x256xf32>
    %c16 = arith.constant 16 : index
    %c0_10 = arith.constant 0 : index
    %28 = vector.load %arg5[%c16, %c0_10] : memref<40x256xf32, #tpu.memory_space<vmem>>, vector<4x256xf32>
    tpu.vector_store %arg5[%c16, %c0_10], %27 {strides = array<i32>} : memref<40x256xf32, #tpu.memory_space<vmem>>, vector<4x256xf32>,
    %29 = vector.extract_strided_slice %18 {offsets = [0, 18], sizes = [4, 256], strides = [1, 1]} : vector<4x290xf32> to vector<4x256xf32>
    %c20 = arith.constant 20 : index
    %c0_11 = arith.constant 0 : index
    %30 = vector.load %arg5[%c20, %c0_11] : memref<40x256xf32, #tpu.memory_space<vmem>>, vector<4x256xf32>
    tpu.vector_store %arg5[%c20, %c0_11], %29 {strides = array<i32>} : memref<40x256xf32, #tpu.memory_space<vmem>>, vector<4x256xf32>,
    %31 = vector.extract_strided_slice %12 {offsets = [0, 32], sizes = [4, 256], strides = [1, 1]} : vector<4x290xf32> to vector<4x256xf32>
    %c24 = arith.constant 24 : index
    %c0_12 = arith.constant 0 : index
    %32 = vector.load %arg5[%c24, %c0_12] : memref<40x256xf32, #tpu.memory_space<vmem>>, vector<4x256xf32>
    tpu.vector_store %arg5[%c24, %c0_12], %31 {strides = array<i32>} : memref<40x256xf32, #tpu.memory_space<vmem>>, vector<4x256xf32>,
    %33 = vector.extract_strided_slice %6 {offsets = [0, 33], sizes = [4, 256], strides = [1, 1]} : vector<4x290xf32> to vector<4x256xf32>
    %c28 = arith.constant 28 : index
    %c0_13 = arith.constant 0 : index
    %34 = vector.load %arg5[%c28, %c0_13] : memref<40x256xf32, #tpu.memory_space<vmem>>, vector<4x256xf32>
    tpu.vector_store %arg5[%c28, %c0_13], %33 {strides = array<i32>} : memref<40x256xf32, #tpu.memory_space<vmem>>, vector<4x256xf32>,
    %35 = vector.extract_strided_slice %18 {offsets = [0, 34], sizes = [4, 256], strides = [1, 1]} : vector<4x290xf32> to vector<4x256xf32>
    %c32 = arith.constant 32 : index
    %c0_14 = arith.constant 0 : index
    %36 = vector.load %arg5[%c32, %c0_14] : memref<40x256xf32, #tpu.memory_space<vmem>>, vector<4x256xf32>
    tpu.vector_store %arg5[%c32, %c0_14], %35 {strides = array<i32>} : memref<40x256xf32, #tpu.memory_space<vmem>>, vector<4x256xf32>,
    %c0_15 = arith.constant 0 : index
    %c0_16 = arith.constant 0 : index
    %37 = vector.load %arg2[%c0_15, %c0_16] : memref<8x40xf32, #tpu.memory_space<vmem>>, vector<8x40xf32>
    %c0_17 = arith.constant 0 : index
    %c0_18 = arith.constant 0 : index
    %38 = vector.load %arg5[%c0_17, %c0_18] : memref<40x256xf32, #tpu.memory_space<vmem>>, vector<40x256xf32>
    %cst_19 = arith.constant dense<0.000000e+00> : vector<8x256xf32>
    %39 = tpu.matmul %37, %38, %cst_19 {dimension_numbers = #tpu.dot_dimension_numbers<[1], [0], [0], [1], [0, 0, 1, 1], [], []>} : vector<8x40xf32>, vector<40x256xf32>, vector<8x256xf32> -> vector<8x256xf32>
    %c0_20 = arith.constant 0 : index
    %c0_21 = arith.constant 0 : index
    %40 = vector.load %arg3[%c0_20, %c0_21] : memref<8x1xf32, #tpu.memory_space<vmem>>, vector<8x1xf32>
    %41 = vector.broadcast %40 : vector<8x1xf32> to vector<8x256xf32>
    %42 = arith.addf %39, %41 : vector<8x256xf32>
    %c0_22 = arith.constant 0 : index
    %c0_23 = arith.constant 0 : index
    %c0_24 = arith.constant 0 : index
    %43 = vector.load %arg4[%c0_22, %c0_23, %c0_24] : memref<1x8x256xf32, #tpu.memory_space<vmem>>, vector<1x8x256xf32>
    %44 = vector.shape_cast %43 : vector<1x8x256xf32> to vector<8x256xf32>
    %45 = vector.shape_cast %42 : vector<8x256xf32> to vector<1x8x256xf32>
    tpu.vector_store %arg4[%c0_22, %c0_23, %c0_24], %45 {strides = array<i32>} : memref<1x8x256xf32, #tpu.memory_space<vmem>>, vector<1x8x256xf32>,
    return
  }
  func.func @transform_0(%arg0: i32) -> (i32, i32, i32) {
    %c0_i32 = arith.constant 0 : i32
    %c0_i32_0 = arith.constant 0 : i32
    %c0_i32_1 = arith.constant 0 : i32
    return %arg0, %c0_i32, %c0_i32_0 : i32, i32, i32
  }
  func.func @transform_1(%arg0: i32) -> (i32, i32) {
    %c0_i32 = arith.constant 0 : i32
    %c0_i32_0 = arith.constant 0 : i32
    %c0_i32_1 = arith.constant 0 : i32
    return %c0_i32, %c0_i32_0 : i32, i32
  }
  func.func @transform_2(%arg0: i32) -> (i32, i32) {
    %c0_i32 = arith.constant 0 : i32
    %c0_i32_0 = arith.constant 0 : i32
    %c0_i32_1 = arith.constant 0 : i32
    return %c0_i32, %c0_i32_0 : i32, i32
  }
  func.func @transform_3(%arg0: i32) -> (i32, i32, i32) {
    %c0_i32 = arith.constant 0 : i32
    %c0_i32_0 = arith.constant 0 : i32
    %c0_i32_1 = arith.constant 0 : i32
    return %arg0, %c0_i32, %c0_i32_0 : i32, i32, i32
  }
}

</mosaic_0001>

<llo_original>
// kernel: main_wrapper_forward.1
$region0: #{main_wrapper_forward.1}
  #allocation0 [shape = 'u32[]', space=smem, size = 0x4, offset = 0x4, fixed_abs, tag = 'smem constant byte address 0x4 - core index']
  #allocation1 [shape = 'u32[144,128]{1,0:T(1,128)}', space=vmem, size = 0x12000, scoped, tag = 'internal scratch']
  #allocation2 [shape = 'f32[40,256]{1,0:T(8,128)}', space=vmem, size = 0xa000, scoped, tag = 'scratch operand']
  %s0 = inlined_call_operand.vmem [shape: f32[2,4,290], index: 0, kind: input, shape index: {}]
  %s1 = inlined_call_operand.vmem [shape: f32[8,40], index: 1, kind: input, shape index: {}]
  %s2 = inlined_call_operand.vmem [shape: f32[8,1], index: 2, kind: input, shape index: {}]
  %s3 = inlined_call_operand.vmem [shape: f32[2,8,256], index: 3, kind: output, shape index: {}]
  %s4 = sld [smem:[#allocation0]]
  $region45: #{main_wrapper_forward.1} parent=0
    _
  %s6 = ssub.s32 1, %s4
  %s7 = scalar_select 0, %s6, %s4
  loop: start=0, step=1, limit=4
  $region2: #{main_wrapper_forward.1} parent=0 // loop_pre_header
    _
  $region3: #{main_wrapper_forward.1} parent=0 // loop_header
    %s9 = sphi 0, %s13
    %p10 = scmp.ge.s32.totalorder %s9, 4
    %s19 = sphi 0, %s21
    %s22 = sphi 0, %s19
    %s23 = sphi 0, %s22
    %s39 = sphi 0, %s23
    %s43 = sphi 0, %s43
    %s45 = sphi 0, %s43
    %s46 = sphi 0, %s45
    %s60 = sphi 0, %s46
    %s64 = sphi 0, %s64
    %s66 = sphi 0, %s64
    %s67 = sphi 0, %s66
    %s81 = sphi 0, %s67
    %s87 = sphi 0, %s89
    %s90 = sphi 0, %s87
    %s91 = sphi 0, %s90
    %s107 = sphi 0, %s91
  $region4: #{main_wrapper_forward.1} parent=0 // loop_header_branch
    %12 = sbr.rel (%p10) target = $region8
  $region5: #{main_wrapper_forward.1} parent=0 // loop_body
    %s14 = ssub.s32 %s9, 1
    %s15 = ssub.s32 %s9, 2
    %s16 = sadd.s32 %s9, 1
    %s17 = ssub.s32 %s9, %s16
    %p18 = scmp.eq.s32.totalorder %s17, 0
    %s20 = sadd.s32 %s19, 1
    %s21 = scalar_select %p18, %s19, %s20
    %p24 = pneg %p18
    %p25 = scmp.eq.s32.totalorder %s9, 1
    %p26 = por %p24, %p25
    %p27 = scmp.ne.s32.totalorder %s19, %s22
    %p28 = scmp.eq.s32.totalorder %s9, 0
    %p29 = por %p27, %p28
    %p30 = scmp.ne.s32.totalorder %s19, %s22
    %p31 = scmp.eq.s32.totalorder %s14, 1
    %p32 = por %p30, %p31
    %p33 = scmp.ne.s32.totalorder %s22, %s23
    %p34 = scmp.eq.s32.totalorder %s14, 0
    %p35 = por %p33, %p34
    %p36 = scmp.ne.s32.totalorder %s22, %s23
    %p37 = scmp.eq.s32.totalorder %s15, 1
    %p38 = por %p36, %p37
    %p40 = scmp.ne.s32.totalorder %s23, %s39
    %p41 = scmp.eq.s32.totalorder %s15, 0
    %p42 = por %p40, %p41
    %s44 = sadd.s32 %s43, 1
    %p47 = scmp.eq.s32.totalorder %s9, 1
    %p48 = scmp.ne.s32.totalorder %s43, %s45
    %p49 = scmp.eq.s32.totalorder %s9, 0
    %p50 = por %p48, %p49
    %p51 = scmp.ne.s32.totalorder %s43, %s45
    %p52 = scmp.eq.s32.totalorder %s14, 1
    %p53 = por %p51, %p52
    %p54 = scmp.ne.s32.totalorder %s45, %s46
    %p55 = scmp.eq.s32.totalorder %s14, 0
    %p56 = por %p54, %p55
    %p57 = scmp.ne.s32.totalorder %s45, %s46
    %p58 = scmp.eq.s32.totalorder %s15, 1
    %p59 = por %p57, %p58
    %p61 = scmp.ne.s32.totalorder %s46, %s60
    %p62 = scmp.eq.s32.totalorder %s15, 0
    %p63 = por %p61, %p62
    %s65 = sadd.s32 %s64, 1
    %p68 = scmp.eq.s32.totalorder %s9, 1
    %p69 = scmp.ne.s32.totalorder %s64, %s66
    %p70 = scmp.eq.s32.totalorder %s9, 0
    %p71 = por %p69, %p70
    %p72 = scmp.ne.s32.totalorder %s64, %s66
    %p73 = scmp.eq.s32.totalorder %s14, 1
    %p74 = por %p72, %p73
    %p75 = scmp.ne.s32.totalorder %s66, %s67
    %p76 = scmp.eq.s32.totalorder %s14, 0
    %p77 = por %p75, %p76
    %p78 = scmp.ne.s32.totalorder %s66, %s67
    %p79 = scmp.eq.s32.totalorder %s15, 1
    %p80 = por %p78, %p79
    %p82 = scmp.ne.s32.totalorder %s67, %s81
    %p83 = scmp.eq.s32.totalorder %s15, 0
    %p84 = por %p82, %p83
    %s85 = ssub.s32 %s9, %s16
    %p86 = scmp.eq.s32.totalorder %s85, 0
    %s88 = sadd.s32 %s87, 1
    %s89 = scalar_select %p86, %s87, %s88
    %p92 = pneg %p86
    %p93 = scmp.eq.s32.totalorder %s9, 1
    %p94 = por %p92, %p93
    %p95 = scmp.ne.s32.totalorder %s87, %s90
    %p96 = scmp.eq.s32.totalorder %s9, 0
    %p97 = por %p95, %p96
    %p98 = scmp.ne.s32.totalorder %s87, %s90
    %p99 = scmp.eq.s32.totalorder %s14, 1
    %p100 = por %p98, %p99
    %p101 = scmp.ne.s32.totalorder %s90, %s91
    %p102 = scmp.eq.s32.totalorder %s14, 0
    %p103 = por %p101, %p102
    %p104 = scmp.ne.s32.totalorder %s90, %s91
    %p105 = scmp.eq.s32.totalorder %s15, 1
    %p106 = por %p104, %p105
    %p108 = scmp.ne.s32.totalorder %s91, %s107
    %p109 = scmp.eq.s32.totalorder %s15, 0
    %p110 = por %p108, %p109
    %p111 = scmp.le.s32.totalorder 1, %s9
    %p112 = scmp.lt.s32.totalorder %s9, 3
    %p113 = pnand %p111, %p112
    %p114 = pneg %p113
    // Predicated region
    $region9: #{main_wrapper_forward.1} parent=5 // pred_check
      _
    $region10: #{main_wrapper_forward.1} parent=5 // pred_check_branch
      %116 = sbr.rel (%p113) target = $region12
    $region11: #{main_wrapper_forward.1} parent=5 // pred_region
      %s117 = ssub.s32 %s9, 1
      // Predicated region
      $region13: #{main_wrapper_forward.1} parent=11 // pred_check
        %p118 = pneg %p56
      $region14: #{main_wrapper_forward.1} parent=11 // pred_check_branch
        %120 = sbr.rel (%p118) target = $region16
      $region15: #{main_wrapper_forward.1} parent=11 // pred_region
        _
      $region16: #{main_wrapper_forward.1} parent=11 // pred_fallthru
        _
      // Predicated region
      $region17: #{main_wrapper_forward.1} parent=11 // pred_check
        %p121 = pneg %p77
      $region18: #{main_wrapper_forward.1} parent=11 // pred_check_branch
        %123 = sbr.rel (%p121) target = $region20
      $region19: #{main_wrapper_forward.1} parent=11 // pred_region
        _
      $region20: #{main_wrapper_forward.1} parent=11 // pred_fallthru
        _
    $region12: #{main_wrapper_forward.1} parent=5 // pred_fallthru
      _
    %p124 = scmp.lt.s32.totalorder %s9, 2
    // Predicated region
    $region21: #{main_wrapper_forward.1} parent=5 // pred_check
      %p125 = pneg %p124
    $region22: #{main_wrapper_forward.1} parent=5 // pred_check_branch
      %127 = sbr.rel (%p125) target = $region24
    $region23: #{main_wrapper_forward.1} parent=5 // pred_region
      // Predicated region
      $region25: #{main_wrapper_forward.1} parent=23 // pred_check
        %p128 = pneg %p29
      $region26: #{main_wrapper_forward.1} parent=23 // pred_check_branch
        %130 = sbr.rel (%p128) target = $region28
      $region27: #{main_wrapper_forward.1} parent=23 // pred_region
        %p131 = scmp.lt.s32.totalorder %s9, 1
        %s132 = scalar_select %p131, %s9, 1
        %s133 = smul.addr %s132, 3
        %s134 = smul.addr %s133, 4
        %s135 = scalar_lea.vmem %s0, %s134
      $region28: #{main_wrapper_forward.1} parent=23 // pred_fallthru
        _
    $region24: #{main_wrapper_forward.1} parent=5 // pred_fallthru
      _
    %p136 = scmp.le.s32.totalorder 1, %s9
    %p137 = scmp.lt.s32.totalorder %s9, 3
    %p138 = pnand %p136, %p137
    %p139 = pneg %p138
    // Predicated region
    $region29: #{main_wrapper_forward.1} parent=5 // pred_check
      _
    $region30: #{main_wrapper_forward.1} parent=5 // pred_check_branch
      %141 = sbr.rel (%p138) target = $region32
    $region31: #{main_wrapper_forward.1} parent=5 // pred_region
      %s142 = ssub.s32 %s9, 1
      %p143 = scmp.lt.s32.totalorder %s14, 1
      %s144 = scalar_select %p143, %s14, 1
      %s145 = smul.addr %s144, 3
      %s146 = smul.addr %s145, 4
      %s147 = scalar_lea.vmem %s0, %s146
      %p148 = pneg %p35
      %p149 = pneg %p32
      %p150 = pneg %p56
      %p151 = pneg %p53
      %p152 = pneg %p77
      %p153 = pneg %p74
      %p154 = pneg %p103
      %p155 = pneg %p100
      %p156 = scmp.lt.s32.totalorder %s14, 1
      %s157 = scalar_select %p156, %s14, 1
      %s158 = smul.addr %s157, 2
      %s159 = smul.addr %s158, 8
      %s160 = scalar_lea.vmem %s3, %s159
      %p161 = scmp.lt.s32.totalorder %s14, 1
      %s162 = scalar_select %p161, %s14, 1
      %s163 = smul.addr %s162, 3
      %s164 = smul.addr %s163, 4
      %s165 = scalar_lea.vmem %s0, %s164
      %p166 = scmp.lt.s32.totalorder %s14, 1
      %s167 = scalar_select %p166, %s14, 1
      %s168 = smul.addr %s167, 2
      %s169 = smul.addr %s168, 8
      %s170 = scalar_lea.vmem %s3, %s169
      %v171 = vlaneseq
      %v172 = vand.u32 %v171, 127
      %v173 = vadd.s32 %v172, 128
      %v174 = vadd.s32 %v172, 256
      %v175 = vand.u32 %v172, 15
      %v176 = vand.u32 %v173, 15
      %v177 = vand.u32 %v174, 15
      %178 = vst [vmem:[#allocation2 + $0x40] sm:$0xf0] 0.0
      %179 = vst [vmem:[#allocation2 + $0x48] sm:$0xf0] 0.0
      %v180 = vld [vmem:[%s165] sm:$0xff]
      %v181 = vld [vmem:[%s165 + $0x8] sm:$0xf]
      %vm182 = vcmp.ne.s32.totalorder %v175, 0
      %vm183 = vcmp.ne.s32.totalorder %v176, 0
      %vm184 = vcmp.ne.s32.totalorder %v177, 0
      %v185 = vsel %vm182, 1, 0
      %v186 = vsel %vm183, 1, 0
      %v187 = vsel %vm184, 1, 0
      %vm188 = vcmp.eq.s32.totalorder %v185, 1
      %vm189 = vcmp.eq.s32.totalorder %v186, 1
      %vm190 = vcmp.eq.s32.totalorder %v187, 1
      %v193 = vcombine.high %v180, %v180
      %v195 = vsel %vm188, %v180, 0.0
      %v196 = vsel %vm189, %v193, 0.0
      %v197 = vsel %vm190, %v181, 0.0
      %vm198 = vcmp.ne.s32.totalorder %v175, 1
      %vm199 = vcmp.ne.s32.totalorder %v176, 1
      %vm200 = vcmp.ne.s32.totalorder %v177, 1
      %v201 = vsel %vm198, 1, 0
      %v202 = vsel %vm199, 1, 0
      %v203 = vsel %vm200, 1, 0
      %vm204 = vcmp.eq.s32.totalorder %v201, 1
      %vm205 = vcmp.eq.s32.totalorder %v202, 1
      %vm206 = vcmp.eq.s32.totalorder %v203, 1
      %v207 = vsel %vm204, %v180, 0.0
      %v208 = vsel %vm205, %v193, 0.0
      %v209 = vsel %vm206, %v181, 0.0
      %210 = vst [vmem:[#allocation2] sm:$0xf] %v195
      %211 = vst [vmem:[#allocation2 + $0x8] sm:$0xf] %v196
      %v212 = vcombine.low %v180, %v180
      %v213 = vcombine.low %v181, %v181
      %214 = vrot.lane.b32.xlu0 %v212, 127
      %v215 = vpop.permute.xlu0 %214
      %216 = vrot.lane.b32.xlu0 %v180, 127
      %v217 = vpop.permute.xlu0 %216
      %218 = vrot.lane.b32.xlu0 %v213, 127
      %v219 = vpop.permute.xlu0 %218
      %vm220 = vcmask 1039360
      %v221 = vsel %vm220, %v215, %v217
      %v222 = vsel %vm220, %v217, %v219
      %225 = vst [vmem:[#allocation2] sm:$0xf0] %v221
      %226 = vst [vmem:[#allocation2 + $0x8] sm:$0xf0] %v222
      %230 = vrot.lane.b32.xlu0 %v207, 126
      %v231 = vpop.permute.xlu0 %230
      %232 = vrot.lane.b32.xlu0 %v208, 126
      %v233 = vpop.permute.xlu0 %232
      %234 = vrot.lane.b32.xlu0 %v209, 126
      %v235 = vpop.permute.xlu0 %234
      %vm236 = vcmask 1031168
      %v237 = vsel %vm236, %v231, %v233
      %v238 = vsel %vm236, %v233, %v235
      %241 = vst [vmem:[#allocation2 + $0x10] sm:$0xf] %v237
      %242 = vst [vmem:[#allocation2 + $0x18] sm:$0xf] %v238
      %v246 = vrot.slane %v195, 4
      %v247 = vrot.slane %v196, 4
      %v248 = vrot.slane %v197, 4
      %249 = vrot.lane.b32.xlu0 %v246, 112
      %v250 = vpop.permute.xlu0 %249
      %251 = vrot.lane.b32.xlu0 %v247, 112
      %v252 = vpop.permute.xlu0 %251
      %253 = vrot.lane.b32.xlu0 %v248, 112
      %v254 = vpop.permute.xlu0 %253
      %vm255 = vcmask 916480
      %v256 = vsel %vm255, %v250, %v252
      %v257 = vsel %vm255, %v252, %v254
      %260 = vst [vmem:[#allocation2 + $0x10] sm:$0xf0] %v256
      %261 = vst [vmem:[#allocation2 + $0x18] sm:$0xf0] %v257
      %262 = vrot.lane.b32.xlu0 %v180, 111
      %v263 = vpop.permute.xlu0 %262
      %264 = vrot.lane.b32.xlu0 %v193, 111
      %v265 = vpop.permute.xlu0 %264
      %266 = vrot.lane.b32.xlu0 %v181, 111
      %v267 = vpop.permute.xlu0 %266
      %vm268 = vcmask 908288
      %v269 = vsel %vm268, %v263, %v265
      %v270 = vsel %vm268, %v265, %v267
      %273 = vst [vmem:[#allocation2 + $0x20] sm:$0xf] %v269
      %274 = vst [vmem:[#allocation2 + $0x28] sm:$0xf] %v270
      %v275 = vrot.slane %v207, 4
      %v276 = vrot.slane %v208, 4
      %v277 = vrot.slane %v209, 4
      %278 = vrot.lane.b32.xlu0 %v275, 110
      %v279 = vpop.permute.xlu0 %278
      %280 = vrot.lane.b32.xlu0 %v276, 110
      %v281 = vpop.permute.xlu0 %280
      %282 = vrot.lane.b32.xlu0 %v277, 110
      %v283 = vpop.permute.xlu0 %282
      %vm284 = vcmask 900096
      %v285 = vsel %vm284, %v279, %v281
      %v286 = vsel %vm284, %v281, %v283
      %289 = vst [vmem:[#allocation2 + $0x20] sm:$0xf0] %v285
      %290 = vst [vmem:[#allocation2 + $0x28] sm:$0xf0] %v286
      %291 = vrot.lane.b32.xlu0 %v195, 96
      %v292 = vpop.permute.xlu0 %291
      %293 = vrot.lane.b32.xlu0 %v196, 96
      %v294 = vpop.permute.xlu0 %293
      %295 = vrot.lane.b32.xlu0 %v197, 96
      %v296 = vpop.permute.xlu0 %295
      %vm297 = vcmask 785408
      %v298 = vsel %vm297, %v292, %v294
      %v299 = vsel %vm297, %v294, %v296
      %302 = vst [vmem:[#allocation2 + $0x30] sm:$0xf] %v298
      %303 = vst [vmem:[#allocation2 + $0x38] sm:$0xf] %v299
      %304 = vrot.lane.b32.xlu0 %v212, 95
      %v305 = vpop.permute.xlu0 %304
      %306 = vrot.lane.b32.xlu0 %v180, 95
      %v307 = vpop.permute.xlu0 %306
      %308 = vrot.lane.b32.xlu0 %v213, 95
      %v309 = vpop.permute.xlu0 %308
      %vm310 = vcmask 777216
      %v311 = vsel %vm310, %v305, %v307
      %v312 = vsel %vm310, %v307, %v309
      %315 = vst [vmem:[#allocation2 + $0x30] sm:$0xf0] %v311
      %316 = vst [vmem:[#allocation2 + $0x38] sm:$0xf0] %v312
      %317 = vrot.lane.b32.xlu0 %v207, 94
      %v318 = vpop.permute.xlu0 %317
      %319 = vrot.lane.b32.xlu0 %v208, 94
      %v320 = vpop.permute.xlu0 %319
      %321 = vrot.lane.b32.xlu0 %v209, 94
      %v322 = vpop.permute.xlu0 %321
      %vm323 = vcmask 769024
      %v324 = vsel %vm323, %v318, %v320
      %v325 = vsel %vm323, %v320, %v322
      %328 = vst [vmem:[#allocation2 + $0x40] sm:$0xf] %v324
      %329 = vst [vmem:[#allocation2 + $0x48] sm:$0xf] %v325
      %v330 = vld [vmem:[%s1] sm:$0xff]
      %v331 = vld [vmem:[#allocation2] sm:$0xff]
      %v332 = vld [vmem:[#allocation2 + $0x8] sm:$0xff]
      %v333 = vld [vmem:[#allocation2 + $0x10] sm:$0xff]
      %v334 = vld [vmem:[#allocation2 + $0x18] sm:$0xff]
      %v335 = vld [vmem:[#allocation2 + $0x20] sm:$0xff]
      %v336 = vld [vmem:[#allocation2 + $0x28] sm:$0xff]
      %v337 = vld [vmem:[#allocation2 + $0x30] sm:$0xff]
      %v338 = vld [vmem:[#allocation2 + $0x38] sm:$0xff]
      %v339 = vld [vmem:[#allocation2 + $0x40] sm:$0xff]
      %v340 = vld [vmem:[#allocation2 + $0x48] sm:$0xff]
      %v341 = vld [vmem:[%s2] sm:$0xff]
      %343 = vset.pattern.permute.xlu0 0
      %344 = vperm.xlu0 %343, %v341
      %v345 = vpop.permute.xlu0 %344
      %vm347 = vcmask 326656
      %v349 = vsel %vm347, %v330, 0
      %351 = vmatprep.subr.mxu0 %v332
      %352 = vmatpush1.msra.mxu0 %v331
      %353 = vmatprep.subr.mxu0 %v334
      %354 = vmatpush1.msra.mxu0 %v333
      %355 = vmatprep.subr.mxu0 %v336
      %356 = vmatpush1.msra.mxu0 %v335
      %357 = vmatprep.subr.mxu0 %v338
      %358 = vmatpush1.msra.mxu0 %v337
      %359 = vmatprep.subr.mxu0 %v340
      %360 = vmatpush1.msra.mxu0 %v339
      %361 = vmatprep.subr.mxu0 0.0
      %362 = vmatpush1.msra.mxu0 0.0
      %363 = vmatprep.subr.mxu0 0.0
      %364 = vmatpush1.msra.mxu0 0.0
      %365 = vmatprep.subr.mxu0 0.0
      %366 = vmatpush1.msra.mxu0 0.0
      %367 = vmatprep.subr.mxu0 0.0
      %368 = vmatpush1.msra.mxu0 0.0
      %369 = vmatprep.subr.mxu0 0.0
      %370 = vmatpush1.msra.mxu0 0.0
      %371 = vmatprep.subr.mxu0 0.0
      %372 = vmatpush1.msra.mxu0 0.0
      %373 = vmatprep.subr.mxu0 0.0
      %374 = vmatpush1.msra.mxu0 0.0
      %375 = vmatprep.subr.mxu0 0.0
      %376 = vmatpush1.msra.mxu0 0.0
      %377 = vmatprep.subr.mxu0 0.0
      %378 = vmatpush1.msra.mxu0 0.0
      %379 = vmatprep.subr.mxu0 0.0
      %380 = vmatpush1.msra.mxu0 0.0
      %381 = vmatprep.subr.mxu0 0.0
      %382 = vmatpush1.msra.mxu0 0.0
      %383 = vmatprep.subr.mxu0 0.0
      %384 = vmatpush1.msra.mxu0 0.0
      %385 = vmatprep.subr.mxu0 0.0
      %386 = vmatpush1.msra.mxu0 0.0
      %387 = vmatprep.subr.mxu0 0.0
      %388 = vmatpush1.msra.mxu0 0.0
      %389 = vmatprep.subr.mxu0 0.0
      %390 = vmatpush1.msra.mxu0 0.0
      %391 = vmatprep.subr.mxu0 0.0
      %392 = vmatpush1.msra.mxu0 0.0
      %393 = vmatprep.subr.mxu0 0.0
      %394 = vmatpush1.msra.mxu0 0.0
      %395 = vmatprep.subr.mxu0 0.0
      %396 = vmatpush1.msra.mxu0 0.0
      %397 = vmatprep.subr.mxu0 0.0
      %398 = vmatpush1.msra.mxu0 0.0
      %399 = vmatprep.subr.mxu0 0.0
      %400 = vmatpush1.msra.mxu0 0.0
      %401 = vmatprep.subr.mxu0 0.0
      %402 = vmatpush1.msra.mxu0 0.0
      %403 = vmatprep.subr.mxu0 0.0
      %404 = vmatpush1.msra.mxu0 0.0
      %405 = vmatprep.subr.mxu0 0.0
      %406 = vmatpush1.msra.mxu0 0.0
      %407 = vmatprep.subr.mxu0 0.0
      %408 = vmatpush1.msra.mxu0 0.0
      %409 = vmatprep.subr.mxu0 0.0
      %410 = vmatpush1.msra.mxu0 0.0
      %411 = vmatprep.subr.mxu0 0.0
      %412 = vmatpush1.msra.mxu0 0.0
      %413 = vmatprep.subr.mxu0 0.0
      %414 = vmatpush1.msra.mxu0 0.0
      %415 = vmatprep.mubr.f32.mxu0 0.0
      %416 = vmatmul.mubr.f32.gmra.mrb[0].mxu0 %v349
      %v417 = vpop.f32.mrb[0].mxu0
      %v418 = vadd.f32 %v345, %v417
      %v419 = vpop.f32.mrb[0].mxu0
      %v420 = vadd.f32 %v345, %v419
      %421 = vdwg.mxu0
      %422 = vst [vmem:[%s170] sm:$0xff] %v418
      %423 = vst [vmem:[%s170 + $0x8] sm:$0xff] %v420
      %p424 = scmp.lt.s32.totalorder %s14, 1
      %s425 = scalar_select %p424, %s14, 1
      %s426 = smul.addr %s425, 2
      %s427 = smul.addr %s426, 8
      %s428 = scalar_lea.vmem %s3, %s427
      // Predicated region
      $region33: #{main_wrapper_forward.1} parent=31 // pred_check
        %p429 = pneg %p100
      $region34: #{main_wrapper_forward.1} parent=31 // pred_check_branch
        %431 = sbr.rel (%p429) target = $region36
      $region35: #{main_wrapper_forward.1} parent=31 // pred_region
        _
      $region36: #{main_wrapper_forward.1} parent=31 // pred_fallthru
        _
    $region32: #{main_wrapper_forward.1} parent=5 // pred_fallthru
      _
    %p432 = scmp.le.s32.totalorder 2, %s9
    // Predicated region
    $region37: #{main_wrapper_forward.1} parent=5 // pred_check
      %p433 = pneg %p432
    $region38: #{main_wrapper_forward.1} parent=5 // pred_check_branch
      %435 = sbr.rel (%p433) target = $region40
    $region39: #{main_wrapper_forward.1} parent=5 // pred_region
      %s436 = ssub.s32 %s9, 2
      // Predicated region
      $region41: #{main_wrapper_forward.1} parent=39 // pred_check
        %p437 = pneg %p106
      $region42: #{main_wrapper_forward.1} parent=39 // pred_check_branch
        %439 = sbr.rel (%p437) target = $region44
      $region43: #{main_wrapper_forward.1} parent=39 // pred_region
        %p440 = scmp.lt.s32.totalorder %s15, 1
        %s441 = scalar_select %p440, %s15, 1
        %s442 = smul.addr %s441, 2
        %s443 = smul.addr %s442, 8
        %s444 = scalar_lea.vmem %s3, %s443
      $region44: #{main_wrapper_forward.1} parent=39 // pred_fallthru
        _
    $region40: #{main_wrapper_forward.1} parent=5 // pred_fallthru
      _
  $region6: #{main_wrapper_forward.1} parent=0 // loop_footer
    %s13 = sadd.s32 1, %s9
  $region7: #{main_wrapper_forward.1} parent=0 // loop_footer_branch
    %8 = sbr.rel target = $region3
  $region8: #{main_wrapper_forward.1} parent=0 // loop_exit
    _

</llo_original>
